<compile_context>
chip_gen: v5e
topology: v5e:2x2
jax: 0.10.0
libtpu: 0.0.40
codegen_flags: <defaults>
</compile_context>

<pallas_src>
import functools
from math import sqrt

import jax
import jax.numpy as jnp
from jax import lax
from jax.experimental import pallas as pl
from jax.experimental.pallas import tpu as pltpu


_NEG_BIG = -1e30  # plain Python float -> jaxpr Literal (no captured constant)


def _round_up(x, m):
    return (x + m - 1) // m * m


def _sdpa_body(scaling, valid_k, q_ref, k_ref, v_ref, mask_ref, o_ref, attn_ref):
    # q_ref: (1, TQ, S), k_ref: (1, Kp, S), v_ref: (1, Kp, Dvp)
    # mask_ref: (1, TQ, Kp) int8 or None, o_ref: (1, TQ, Dvp), attn_ref: (1, TQ, Kp)
    q = q_ref[0]                       # native dtype (f32/bf16), no upcast
    k = k_ref[0]
    v = v_ref[0]

    # Apply the softmax scale to q (cheaper: TQ*S vs TQ*K multiplies).
    qs = q * scaling                   # Python float -> Literal, dtype follows q

    # scores = q @ k.T without materializing a transpose: contract last dims.
    scores = lax.dot_general(
        qs, k,
        dimension_numbers=(((1,), (1,)), ((), ())),
        preferred_element_type=jnp.float32,
    )                                   # (TQ, Kp) float32

    # User-supplied padding mask (nonzero -> masked out).
    if mask_ref is not None:
        scores = jnp.where(mask_ref[0] != 0, _NEG_BIG, scores)

    # Mask out zero-padded K columns (static decision at trace time).
    kp = scores.shape[-1]
    if valid_k < kp:
        col = lax.broadcasted_iota(jnp.int32, scores.shape, 1)
        scores = jnp.where(col >= valid_k, _NEG_BIG, scores)

    # Softmax over seq_len, in f32.
    m = jnp.max(scores, axis=-1, keepdims=True)
    p = jnp.exp(scores - m)
    denom = jnp.sum(p, axis=-1, keepdims=True)
    attn = p * pl.reciprocal(denom, approx=False)   # exact softmax

    # out = attn @ v ; feed the MXU in v's dtype, accumulate in f32.
    out = jnp.dot(attn.astype(v.dtype), v, preferred_element_type=jnp.float32)

    o_ref[0] = out.astype(o_ref.dtype)
    attn_ref[0] = attn.astype(attn_ref.dtype)


def _sdpa_kernel_mask(scaling, valid_k, q_ref, k_ref, v_ref, mask_ref, o_ref, attn_ref):
    _sdpa_body(scaling, valid_k, q_ref, k_ref, v_ref, mask_ref, o_ref, attn_ref)


def _sdpa_kernel_nomask(scaling, valid_k, q_ref, k_ref, v_ref, o_ref, attn_ref):
    _sdpa_body(scaling, valid_k, q_ref, k_ref, v_ref, None, o_ref, attn_ref)


def scaled_dot_product_attention(q, k, v, mask=None, *, tq=256):
    """Pallas TPU implementation of ScaledDotProductAttention.forward.

    q: (B, Q, S), k: (B, K, S), v: (B, K, Dv), mask: optional (B, Q, K) bool/int.
    Returns (out (B, Q, Dv), attn (B, Q, K)).
    """
    B, Q, S = q.shape
    _, K, _ = k.shape
    Dv = v.shape[-1]
    scaling = float(1.0 / sqrt(S))

    # Tile Q; pad K / Dv to lane-dense multiples of 128 for unmasked stores.
    TQ = min(tq, _round_up(Q, 8))
    Qp = _round_up(Q, TQ)
    Kp = _round_up(K, 128)
    Dvp = _round_up(Dv, 128)

    q_p = jnp.pad(q, ((0, 0), (0, Qp - Q), (0, 0))) if Qp != Q else q
    k_p = jnp.pad(k, ((0, 0), (0, Kp - K), (0, 0))) if Kp != K else k
    v_p = (jnp.pad(v, ((0, 0), (0, Kp - K), (0, Dvp - Dv)))
           if (Kp != K or Dvp != Dv) else v)

    in_specs = [
        pl.BlockSpec((1, TQ, S), lambda b, qi: (b, qi, 0)),
        # K/V block index is constant along the inner (Q-tile) grid axis, so
        # Pallas re-DMAs them only when the batch index changes.
        pl.BlockSpec((1, Kp, S), lambda b, qi: (b, 0, 0)),
        pl.BlockSpec((1, Kp, Dvp), lambda b, qi: (b, 0, 0)),
    ]
    args = [q_p, k_p, v_p]

    if mask is not None:
        m8 = mask.astype(jnp.int8)
        if Qp != Q or Kp != K:
            m8 = jnp.pad(m8, ((0, 0), (0, Qp - Q), (0, Kp - K)))
        in_specs.append(pl.BlockSpec((1, TQ, Kp), lambda b, qi: (b, qi, 0)))
        args.append(m8)
        kernel = functools.partial(_sdpa_kernel_mask, scaling, K)
    else:
        kernel = functools.partial(_sdpa_kernel_nomask, scaling, K)

    out_p, attn_p = pl.pallas_call(
        kernel,
        out_shape=(
            jax.ShapeDtypeStruct((B, Qp, Dvp), q.dtype),
            jax.ShapeDtypeStruct((B, Qp, Kp), q.dtype),
        ),
        grid_spec=pltpu.PrefetchScalarGridSpec(
            num_scalar_prefetch=0,
            grid=(B, Qp // TQ),
            in_specs=in_specs,
            out_specs=[
                pl.BlockSpec((1, TQ, Dvp), lambda b, qi: (b, qi, 0)),
                pl.BlockSpec((1, TQ, Kp), lambda b, qi: (b, qi, 0)),
            ],
        ),
        compiler_params=pltpu.CompilerParams(
            dimension_semantics=("parallel", "parallel"),
            vmem_limit_bytes=64 * 1024 * 1024,
        ),
    )(*args)

    out = out_p[:, :Q, :Dv]
    attn = attn_p[:, :Q, :K]
    return out, attn


def _reference(q, k, v, mask, scaling):
    scores = jnp.einsum("bqs,bks->bqk", q, k) * scaling
    if mask is not None:
        scores = jnp.where(mask != 0, -jnp.inf, scores)
    attn = jax.nn.softmax(scores, axis=-1)
    return jnp.einsum("bqk,bkd->bqd", attn, v), attn


if __name__ == "__main__":
    key = jax.random.PRNGKey(0)
    kq, kk, kv, km = jax.random.split(key, 4)

    B, Q, K, S, Dv = 2, 8, 8, 32, 32
    q = jax.random.normal(kq, (B, Q, S), dtype=jnp.float32)
    k = jax.random.normal(kk, (B, K, S), dtype=jnp.float32)
    v = jax.random.normal(kv, (B, K, Dv), dtype=jnp.float32)
    # Byte mask with some padding positions masked (never a fully-masked row).
    mask = (jax.random.uniform(km, (B, Q, K)) > 0.8).at[:, :, 0].set(False)

    # Masked path.
    out, attn = scaled_dot_product_attention(q, k, v, mask)
    jax.block_until_ready(out)
    jax.block_until_ready(attn)
    ref_out, ref_attn = _reference(q, k, v, mask, 1.0 / sqrt(S))
    assert jnp.allclose(out, ref_out, atol=1e-5, rtol=1e-5)
    assert jnp.allclose(attn, ref_attn, atol=1e-5, rtol=1e-5)
    assert jnp.allclose(jnp.sum(attn, axis=-1), 1.0, atol=1e-5)

    # No-mask path (no mask HBM stream is allocated or DMA'd).
    out2, attn2 = scaled_dot_product_attention(q, k, v, None)
    jax.block_until_ready(out2)
    ref_out2, ref_attn2 = _reference(q, k, v, None, 1.0 / sqrt(S))
    assert jnp.allclose(out2, ref_out2, atol=1e-5, rtol=1e-5)
    assert jnp.allclose(attn2, ref_attn2, atol=1e-5, rtol=1e-5)
    assert jnp.allclose(jnp.sum(attn2, axis=-1), 1.0, atol=1e-5)

    print("KERNEL_OK")
</pallas_src>

<mosaic_0001>
module attributes {stable_mosaic.version = 11 : i64} {
  func.func @_sdpa_kernel_mask(%arg0: i32, %arg1: i32, %arg2: memref<1x8x32xf32, #tpu.memory_space<vmem>>, %arg3: memref<1x128x32xf32, #tpu.memory_space<vmem>>, %arg4: memref<1x128x128xf32, #tpu.memory_space<vmem>>, %arg5: memref<1x8x128xi8, #tpu.memory_space<vmem>>, %arg6: memref<1x8x128xf32, #tpu.memory_space<vmem>>, %arg7: memref<1x8x128xf32, #tpu.memory_space<vmem>>) attributes {dimension_semantics = [#tpu.dimension_semantics<parallel>, #tpu.dimension_semantics<parallel>], iteration_bounds = array<i64: 2, 1>, scalar_prefetch = 0 : i64, scratch_operands = 0 : i64, tpu.core_type = #tpu.core_type<tc>, window_params = [{transform_indices = @transform_0, window_bounds = array<i64: 1, 8, 32>}, {transform_indices = @transform_1, window_bounds = array<i64: 1, 128, 32>}, {transform_indices = @transform_2, window_bounds = array<i64: 1, 128, 128>}, {transform_indices = @transform_3, window_bounds = array<i64: 1, 8, 128>}, {transform_indices = @transform_4, window_bounds = array<i64: 1, 8, 128>}, {transform_indices = @transform_5, window_bounds = array<i64: 1, 8, 128>}]} {
    %c0 = arith.constant 0 : index
    %c0_0 = arith.constant 0 : index
    %c0_1 = arith.constant 0 : index
    %0 = vector.load %arg2[%c0, %c0_0, %c0_1] : memref<1x8x32xf32, #tpu.memory_space<vmem>>, vector<1x8x32xf32>
    %1 = vector.shape_cast %0 : vector<1x8x32xf32> to vector<8x32xf32>
    %c0_2 = arith.constant 0 : index
    %c0_3 = arith.constant 0 : index
    %c0_4 = arith.constant 0 : index
    %2 = vector.load %arg3[%c0_2, %c0_3, %c0_4] : memref<1x128x32xf32, #tpu.memory_space<vmem>>, vector<1x128x32xf32>
    %3 = vector.shape_cast %2 : vector<1x128x32xf32> to vector<128x32xf32>
    %c0_5 = arith.constant 0 : index
    %c0_6 = arith.constant 0 : index
    %c0_7 = arith.constant 0 : index
    %4 = vector.load %arg4[%c0_5, %c0_6, %c0_7] : memref<1x128x128xf32, #tpu.memory_space<vmem>>, vector<1x128x128xf32>
    %5 = vector.shape_cast %4 : vector<1x128x128xf32> to vector<128x128xf32>
    %cst = arith.constant 0.176776692 : f32
    %6 = vector.broadcast %cst : f32 to vector<8x32xf32>
    %7 = arith.mulf %1, %6 : vector<8x32xf32>
    %cst_8 = arith.constant dense<0.000000e+00> : vector<8x128xf32>
    %8 = tpu.matmul %7, %3, %cst_8 {dimension_numbers = #tpu.dot_dimension_numbers<[1], [1], [0], [0], [0, 0, 1, 0], [], []>} : vector<8x32xf32>, vector<128x32xf32>, vector<8x128xf32> -> vector<8x128xf32>
    %c0_9 = arith.constant 0 : index
    %c0_10 = arith.constant 0 : index
    %c0_11 = arith.constant 0 : index
    %9 = vector.load %arg5[%c0_9, %c0_10, %c0_11] : memref<1x8x128xi8, #tpu.memory_space<vmem>>, vector<1x8x128xi8>
    %10 = vector.shape_cast %9 : vector<1x8x128xi8> to vector<8x128xi8>
    %c0_i8 = arith.constant 0 : i8
    %11 = vector.broadcast %c0_i8 : i8 to vector<8x128xi8>
    %12 = arith.cmpi ne, %10, %11 : vector<8x128xi8>
    %cst_12 = arith.constant -1.000000e+30 : f32
    %13 = vector.broadcast %cst_12 : f32 to vector<8x128xf32>
    %14 = arith.select %12, %13, %8 : vector<8x128xi1>, vector<8x128xf32>
    %15 = tpu.iota {dimensions = array<i32: 1>} : vector<8x128xi32>
    %c8_i32 = arith.constant 8 : i32
    %16 = vector.broadcast %c8_i32 : i32 to vector<8x128xi32>
    %17 = arith.cmpi sge, %15, %16 : vector<8x128xi32>
    %cst_13 = arith.constant -1.000000e+30 : f32
    %18 = vector.broadcast %cst_13 : f32 to vector<8x128xf32>
    %19 = arith.select %17, %18, %14 : vector<8x128xi1>, vector<8x128xf32>
    %cst_14 = arith.constant dense<0xFF800000> : vector<8xf32>
    %20 = vector.multi_reduction <maximumf>, %19, %cst_14 [1] : vector<8x128xf32> to vector<8xf32>
    %21 = vector.shape_cast %20 : vector<8xf32> to vector<8x1xf32>
    %22 = vector.broadcast %21 : vector<8x1xf32> to vector<8x128xf32>
    %23 = arith.subf %19, %22 : vector<8x128xf32>
    %24 = math.exp %23 : vector<8x128xf32>
    %cst_15 = arith.constant dense<0.000000e+00> : vector<8xf32>
    %25 = vector.multi_reduction <add>, %24, %cst_15 [1] : vector<8x128xf32> to vector<8xf32>
    %26 = vector.shape_cast %25 : vector<8xf32> to vector<8x1xf32>
    %27 = tpu.reciprocal %26 : vector<8x1xf32> -> vector<8x1xf32>
    %28 = vector.broadcast %27 : vector<8x1xf32> to vector<8x128xf32>
    %29 = arith.mulf %24, %28 : vector<8x128xf32>
    %cst_16 = arith.constant dense<0.000000e+00> : vector<8x128xf32>
    %30 = tpu.matmul %29, %5, %cst_16 {dimension_numbers = #tpu.dot_dimension_numbers<[1], [0], [0], [1], [0, 0, 1, 1], [], []>} : vector<8x128xf32>, vector<128x128xf32>, vector<8x128xf32> -> vector<8x128xf32>
    %c0_17 = arith.constant 0 : index
    %c0_18 = arith.constant 0 : index
    %c0_19 = arith.constant 0 : index
    %31 = vector.load %arg6[%c0_17, %c0_18, %c0_19] : memref<1x8x128xf32, #tpu.memory_space<vmem>>, vector<1x8x128xf32>
    %32 = vector.shape_cast %31 : vector<1x8x128xf32> to vector<8x128xf32>
    %33 = vector.shape_cast %30 : vector<8x128xf32> to vector<1x8x128xf32>
    tpu.vector_store %arg6[%c0_17, %c0_18, %c0_19], %33 {strides = array<i32>} : memref<1x8x128xf32, #tpu.memory_space<vmem>>, vector<1x8x128xf32>,
    %c0_20 = arith.constant 0 : index
    %c0_21 = arith.constant 0 : index
    %c0_22 = arith.constant 0 : index
    %34 = vector.load %arg7[%c0_20, %c0_21, %c0_22] : memref<1x8x128xf32, #tpu.memory_space<vmem>>, vector<1x8x128xf32>
    %35 = vector.shape_cast %34 : vector<1x8x128xf32> to vector<8x128xf32>
    %36 = vector.shape_cast %29 : vector<8x128xf32> to vector<1x8x128xf32>
    tpu.vector_store %arg7[%c0_20, %c0_21, %c0_22], %36 {strides = array<i32>} : memref<1x8x128xf32, #tpu.memory_space<vmem>>, vector<1x8x128xf32>,
    return
  }
  func.func @transform_0(%arg0: i32, %arg1: i32) -> (i32, i32, i32) {
    %c0_i32 = arith.constant 0 : i32
    %c0_i32_0 = arith.constant 0 : i32
    return %arg0, %arg1, %c0_i32 : i32, i32, i32
  }
  func.func @transform_1(%arg0: i32, %arg1: i32) -> (i32, i32, i32) {
    %c0_i32 = arith.constant 0 : i32
    %c0_i32_0 = arith.constant 0 : i32
    %c0_i32_1 = arith.constant 0 : i32
    return %arg0, %c0_i32, %c0_i32_0 : i32, i32, i32
  }
  func.func @transform_2(%arg0: i32, %arg1: i32) -> (i32, i32, i32) {
    %c0_i32 = arith.constant 0 : i32
    %c0_i32_0 = arith.constant 0 : i32
    %c0_i32_1 = arith.constant 0 : i32
    return %arg0, %c0_i32, %c0_i32_0 : i32, i32, i32
  }
  func.func @transform_3(%arg0: i32, %arg1: i32) -> (i32, i32, i32) {
    %c0_i32 = arith.constant 0 : i32
    %c0_i32_0 = arith.constant 0 : i32
    return %arg0, %arg1, %c0_i32 : i32, i32, i32
  }
  func.func @transform_4(%arg0: i32, %arg1: i32) -> (i32, i32, i32) {
    %c0_i32 = arith.constant 0 : i32
    %c0_i32_0 = arith.constant 0 : i32
    return %arg0, %arg1, %c0_i32 : i32, i32, i32
  }
  func.func @transform_5(%arg0: i32, %arg1: i32) -> (i32, i32, i32) {
    %c0_i32 = arith.constant 0 : i32
    %c0_i32_0 = arith.constant 0 : i32
    return %arg0, %arg1, %c0_i32 : i32, i32, i32
  }
}

</mosaic_0001>

<llo_original>
// kernel: tpu_custom_call.1
$region0: #{tpu_custom_call.1}
  #allocation0 [shape = 'u32[]', space=smem, size = 0x4, offset = 0x4, fixed_abs, tag = 'smem constant byte address 0x4 - core index']
  #allocation1 [shape = 'u32[72,128]{1,0:T(1,128)}', space=vmem, size = 0x9000, scoped, tag = 'internal scratch']
  %s0 = inlined_call_operand.vmem [shape: f32[2,8,32], index: 0, kind: input, shape index: {}]
  %s1 = inlined_call_operand.vmem [shape: f32[2,128,32], index: 1, kind: input, shape index: {}]
  %s2 = inlined_call_operand.vmem [shape: f32[2,128,128], index: 2, kind: input, shape index: {}]
  %s3 = inlined_call_operand.vmem [shape: s8[2,8,128], index: 3, kind: input, shape index: {}]
  %s4 = inlined_call_operand.hbm [shape: f32[2,8,128], index: 4, kind: output, shape index: {0}]
  %s5 = inlined_call_operand.hbm [shape: f32[2,8,128], index: 5, kind: output, shape index: {1}]
  %6 = xla_tuple %s4, %s5
  %s7 = sld [smem:[#allocation0]]
  $region57: #{tpu_custom_call.1} parent=0
    _
  %s9 = ssub.s32 1, %s7
  %s10 = scalar_select 0, %s9, %s7
  $region1: #{tpu_custom_call.1} parent=0
    #allocation2 [shape = 'u8[8192]{0}', space=vmem, size = 0x2000, scoped, tag = 'output window, operand 0']
    #allocation3 [shape = 's32[2]{0}', space=sflag, size = 0x8, scoped, tag = 'scoped memory for tpu_custom_call.1']
    #allocation4 [shape = 'u8[8192]{0}', space=vmem, size = 0x2000, scoped, tag = 'output window, operand 1']
    #allocation5 [shape = 's32[2]{0}', space=sflag, size = 0x8, scoped, tag = 'scoped memory for tpu_custom_call.1']
    %11 = vsyncpa [#allocation3], 0
    %s12 = scalar_lea.sflag [#allocation3], 1
    %13 = vsyncpa %s12, 0
    %14 = vsyncpa [#allocation5], 0
    %s15 = scalar_lea.sflag [#allocation5], 1
    %16 = vsyncpa %s15, 0
    loop: start=0, step=1, limit=4
    $region2: #{tpu_custom_call.1} parent=1 // loop_pre_header
      _
    $region3: #{tpu_custom_call.1} parent=1 // loop_header
      %s18 = sphi 0, %s22
      %p19 = scmp.ge.s32.totalorder %s18, 4
      %s25 = sphi 0, %s37
      %s26 = sphi 0, %s33
      %s27 = sphi 0, %s25
      %s28 = sphi 0, %s26
      %s29 = sphi 0, %s27
      %s30 = sphi 0, %s28
      %s42 = sphi 0, %s44
      %s45 = sphi 0, %s42
      %s46 = sphi 0, %s45
      %s62 = sphi 0, %s46
      %s68 = sphi 0, %s70
      %s71 = sphi 0, %s68
      %s72 = sphi 0, %s71
      %s88 = sphi 0, %s72
      %s94 = sphi 0, %s96
      %s97 = sphi 0, %s94
      %s98 = sphi 0, %s97
      %s114 = sphi 0, %s98
      %s122 = sphi 0, %s124
      %s125 = sphi 0, %s122
      %s126 = sphi 0, %s125
      %s142 = sphi 0, %s126
      %s150 = sphi 0, %s152
      %s153 = sphi 0, %s150
      %s154 = sphi 0, %s153
      %s170 = sphi 0, %s154
      %s178 = sphi 0, %s180
      %s181 = sphi 0, %s178
      %s182 = sphi 0, %s181
      %s198 = sphi 0, %s182
    $region4: #{tpu_custom_call.1} parent=1 // loop_header_branch
      %21 = sbr.rel (%p19) target = $region8
    $region5: #{tpu_custom_call.1} parent=1 // loop_body
      %s23 = ssub.s32 %s18, 1
      %s24 = ssub.s32 %s18, 2
      %s31 = sadd.s32 1, %s26
      %p32 = scmp.ge.s32.totalorder %s31, 1
      %s33 = scalar_select %p32, 0, %s31
      %s34 = sadd.s32 1, %s25
      %s35 = scalar_select %p32, %s34, %s25
      %p36 = scmp.ge.s32.totalorder %s35, 2
      %s37 = scalar_select %p36, 0, %s35
      %s38 = ssub.s32 %s25, %s37
      %s39 = ssub.s32 %s26, %s33
      %s40 = sor.u32 %s38, %s39
      %p41 = scmp.eq.s32.totalorder %s40, 0
      %s43 = sadd.s32 %s42, 1
      %s44 = scalar_select %p41, %s42, %s43
      %p47 = pneg %p41
      %p48 = scmp.eq.s32.totalorder %s18, 1
      %p49 = por %p47, %p48
      %p50 = scmp.ne.s32.totalorder %s42, %s45
      %p51 = scmp.eq.s32.totalorder %s18, 0
      %p52 = por %p50, %p51
      %p53 = scmp.ne.s32.totalorder %s42, %s45
      %p54 = scmp.eq.s32.totalorder %s23, 1
      %p55 = por %p53, %p54
      %p56 = scmp.ne.s32.totalorder %s45, %s46
      %p57 = scmp.eq.s32.totalorder %s23, 0
      %p58 = por %p56, %p57
      %p59 = scmp.ne.s32.totalorder %s45, %s46
      %p60 = scmp.eq.s32.totalorder %s24, 1
      %p61 = por %p59, %p60
      %p63 = scmp.ne.s32.totalorder %s46, %s62
      %p64 = scmp.eq.s32.totalorder %s24, 0
      %p65 = por %p63, %p64
      %s66 = ssub.s32 %s25, %s37
      %p67 = scmp.eq.s32.totalorder %s66, 0
      %s69 = sadd.s32 %s68, 1
      %s70 = scalar_select %p67, %s68, %s69
      %p73 = pneg %p67
      %p74 = scmp.eq.s32.totalorder %s18, 1
      %p75 = por %p73, %p74
      %p76 = scmp.ne.s32.totalorder %s68, %s71
      %p77 = scmp.eq.s32.totalorder %s18, 0
      %p78 = por %p76, %p77
      %p79 = scmp.ne.s32.totalorder %s68, %s71
      %p80 = scmp.eq.s32.totalorder %s23, 1
      %p81 = por %p79, %p80
      %p82 = scmp.ne.s32.totalorder %s71, %s72
      %p83 = scmp.eq.s32.totalorder %s23, 0
      %p84 = por %p82, %p83
      %p85 = scmp.ne.s32.totalorder %s71, %s72
      %p86 = scmp.eq.s32.totalorder %s24, 1
      %p87 = por %p85, %p86
      %p89 = scmp.ne.s32.totalorder %s72, %s88
      %p90 = scmp.eq.s32.totalorder %s24, 0
      %p91 = por %p89, %p90
      %s92 = ssub.s32 %s25, %s37
      %p93 = scmp.eq.s32.totalorder %s92, 0
      %s95 = sadd.s32 %s94, 1
      %s96 = scalar_select %p93, %s94, %s95
      %p99 = pneg %p93
      %p100 = scmp.eq.s32.totalorder %s18, 1
      %p101 = por %p99, %p100
      %p102 = scmp.ne.s32.totalorder %s94, %s97
      %p103 = scmp.eq.s32.totalorder %s18, 0
      %p104 = por %p102, %p103
      %p105 = scmp.ne.s32.totalorder %s94, %s97
      %p106 = scmp.eq.s32.totalorder %s23, 1
      %p107 = por %p105, %p106
      %p108 = scmp.ne.s32.totalorder %s97, %s98
      %p109 = scmp.eq.s32.totalorder %s23, 0
      %p110 = por %p108, %p109
      %p111 = scmp.ne.s32.totalorder %s97, %s98
      %p112 = scmp.eq.s32.totalorder %s24, 1
      %p113 = por %p111, %p112
      %p115 = scmp.ne.s32.totalorder %s98, %s114
      %p116 = scmp.eq.s32.totalorder %s24, 0
      %p117 = por %p115, %p116
      %s118 = ssub.s32 %s25, %s37
      %s119 = ssub.s32 %s26, %s33
      %s120 = sor.u32 %s118, %s119
      %p121 = scmp.eq.s32.totalorder %s120, 0
      %s123 = sadd.s32 %s122, 1
      %s124 = scalar_select %p121, %s122, %s123
      %p127 = pneg %p121
      %p128 = scmp.eq.s32.totalorder %s18, 1
      %p129 = por %p127, %p128
      %p130 = scmp.ne.s32.totalorder %s122, %s125
      %p131 = scmp.eq.s32.totalorder %s18, 0
      %p132 = por %p130, %p131
      %p133 = scmp.ne.s32.totalorder %s122, %s125
      %p134 = scmp.eq.s32.totalorder %s23, 1
      %p135 = por %p133, %p134
      %p136 = scmp.ne.s32.totalorder %s125, %s126
      %p137 = scmp.eq.s32.totalorder %s23, 0
      %p138 = por %p136, %p137
      %p139 = scmp.ne.s32.totalorder %s125, %s126
      %p140 = scmp.eq.s32.totalorder %s24, 1
      %p141 = por %p139, %p140
      %p143 = scmp.ne.s32.totalorder %s126, %s142
      %p144 = scmp.eq.s32.totalorder %s24, 0
      %p145 = por %p143, %p144
      %s146 = ssub.s32 %s25, %s37
      %s147 = ssub.s32 %s26, %s33
      %s148 = sor.u32 %s146, %s147
      %p149 = scmp.eq.s32.totalorder %s148, 0
      %s151 = sadd.s32 %s150, 1
      %s152 = scalar_select %p149, %s150, %s151
      %p155 = pneg %p149
      %p156 = scmp.eq.s32.totalorder %s18, 1
      %p157 = por %p155, %p156
      %p158 = scmp.ne.s32.totalorder %s150, %s153
      %p159 = scmp.eq.s32.totalorder %s18, 0
      %p160 = por %p158, %p159
      %p161 = scmp.ne.s32.totalorder %s150, %s153
      %p162 = scmp.eq.s32.totalorder %s23, 1
      %p163 = por %p161, %p162
      %p164 = scmp.ne.s32.totalorder %s153, %s154
      %p165 = scmp.eq.s32.totalorder %s23, 0
      %p166 = por %p164, %p165
      %p167 = scmp.ne.s32.totalorder %s153, %s154
      %p168 = scmp.eq.s32.totalorder %s24, 1
      %p169 = por %p167, %p168
      %p171 = scmp.ne.s32.totalorder %s154, %s170
      %p172 = scmp.eq.s32.totalorder %s24, 0
      %p173 = por %p171, %p172
      %s174 = ssub.s32 %s25, %s37
      %s175 = ssub.s32 %s26, %s33
      %s176 = sor.u32 %s174, %s175
      %p177 = scmp.eq.s32.totalorder %s176, 0
      %s179 = sadd.s32 %s178, 1
      %s180 = scalar_select %p177, %s178, %s179
      %p183 = pneg %p177
      %p184 = scmp.eq.s32.totalorder %s18, 1
      %p185 = por %p183, %p184
      %p186 = scmp.ne.s32.totalorder %s178, %s181
      %p187 = scmp.eq.s32.totalorder %s18, 0
      %p188 = por %p186, %p187
      %p189 = scmp.ne.s32.totalorder %s178, %s181
      %p190 = scmp.eq.s32.totalorder %s23, 1
      %p191 = por %p189, %p190
      %p192 = scmp.ne.s32.totalorder %s181, %s182
      %p193 = scmp.eq.s32.totalorder %s23, 0
      %p194 = por %p192, %p193
      %p195 = scmp.ne.s32.totalorder %s181, %s182
      %p196 = scmp.eq.s32.totalorder %s24, 1
      %p197 = por %p195, %p196
      %p199 = scmp.ne.s32.totalorder %s182, %s198
      %p200 = scmp.eq.s32.totalorder %s24, 0
      %p201 = por %p199, %p200
      %p202 = scmp.le.s32.totalorder 1, %s18
      %p203 = scmp.lt.s32.totalorder %s18, 3
      %p204 = pnand %p202, %p203
      %p205 = pneg %p204
      // Predicated region
      $region9: #{tpu_custom_call.1} parent=5 // pred_check
        _
      $region10: #{tpu_custom_call.1} parent=5 // pred_check_branch
        %207 = sbr.rel (%p204) target = $region12
      $region11: #{tpu_custom_call.1} parent=5 // pred_region
        %s208 = ssub.s32 %s18, 1
      $region12: #{tpu_custom_call.1} parent=5 // pred_fallthru
        _
      %p209 = scmp.lt.s32.totalorder %s18, 2
      // Predicated region
      $region13: #{tpu_custom_call.1} parent=5 // pred_check
        %p210 = pneg %p209
      $region14: #{tpu_custom_call.1} parent=5 // pred_check_branch
        %212 = sbr.rel (%p210) target = $region16
      $region15: #{tpu_custom_call.1} parent=5 // pred_region
        // Predicated region
        $region17: #{tpu_custom_call.1} parent=15 // pred_check
          %p213 = pneg %p52
        $region18: #{tpu_custom_call.1} parent=15 // pred_check_branch
          %215 = sbr.rel (%p213) target = $region20
        $region19: #{tpu_custom_call.1} parent=15 // pred_region
          %p216 = scmp.lt.s32.totalorder %s25, 1
          %s217 = scalar_select %p216, %s25, 1
          %p218 = scmp.lt.s32.totalorder %s26, 0
          %s219 = scalar_select %p218, %s26, 0
          %s220 = sadd.s32 %s219, %s217
          %s221 = smul.addr %s220, 8
          %s222 = scalar_lea.vmem %s0, %s221
        $region20: #{tpu_custom_call.1} parent=15 // pred_fallthru
          _
        // Predicated region
        $region21: #{tpu_custom_call.1} parent=15 // pred_check
          %p223 = pneg %p78
        $region22: #{tpu_custom_call.1} parent=15 // pred_check_branch
          %225 = sbr.rel (%p223) target = $region24
        $region23: #{tpu_custom_call.1} parent=15 // pred_region
          %p226 = scmp.lt.s32.totalorder %s25, 1
          %s227 = scalar_select %p226, %s25, 1
          %s228 = smul.addr %s227, 16
          %s229 = smul.addr %s228, 8
          %s230 = scalar_lea.vmem %s1, %s229
        $region24: #{tpu_custom_call.1} parent=15 // pred_fallthru
          _
        // Predicated region
        $region25: #{tpu_custom_call.1} parent=15 // pred_check
          %p231 = pneg %p104
        $region26: #{tpu_custom_call.1} parent=15 // pred_check_branch
          %233 = sbr.rel (%p231) target = $region28
        $region27: #{tpu_custom_call.1} parent=15 // pred_region
          %p234 = scmp.lt.s32.totalorder %s25, 1
          %s235 = scalar_select %p234, %s25, 1
          %s236 = smul.addr %s235, 16
          %s237 = smul.addr %s236, 8
          %s238 = scalar_lea.vmem %s2, %s237
        $region28: #{tpu_custom_call.1} parent=15 // pred_fallthru
          _
        // Predicated region
        $region29: #{tpu_custom_call.1} parent=15 // pred_check
          %p239 = pneg %p132
        $region30: #{tpu_custom_call.1} parent=15 // pred_check_branch
          %241 = sbr.rel (%p239) target = $region32
        $region31: #{tpu_custom_call.1} parent=15 // pred_region
          %p242 = scmp.lt.s32.totalorder %s25, 1
          %s243 = scalar_select %p242, %s25, 1
          %p244 = scmp.lt.s32.totalorder %s26, 0
          %s245 = scalar_select %p244, %s26, 0
          %s246 = sadd.s32 %s245, %s243
          %s247 = smul.addr %s246, 2
          %s248 = scalar_lea.vmem %s3, %s247
        $region32: #{tpu_custom_call.1} parent=15 // pred_fallthru
          _
      $region16: #{tpu_custom_call.1} parent=5 // pred_fallthru
        _
      %p249 = scmp.le.s32.totalorder 1, %s18
      %p250 = scmp.lt.s32.totalorder %s18, 3
      %p251 = pnand %p249, %p250
      %p252 = pneg %p251
      // Predicated region
      $region33: #{tpu_custom_call.1} parent=5 // pred_check
        _
      $region34: #{tpu_custom_call.1} parent=5 // pred_check_branch
        %254 = sbr.rel (%p251) target = $region36
      $region35: #{tpu_custom_call.1} parent=5 // pred_region
        %s255 = ssub.s32 %s18, 1
        %p256 = scmp.lt.s32.totalorder %s27, 1
        %s257 = scalar_select %p256, %s27, 1
        %p258 = scmp.lt.s32.totalorder %s28, 0
        %s259 = scalar_select %p258, %s28, 0
        %s260 = sadd.s32 %s259, %s257
        %s261 = smul.addr %s260, 8
        %s262 = scalar_lea.vmem %s0, %s261
        %p263 = pneg %p58
        %p264 = pneg %p55
        %p265 = scmp.lt.s32.totalorder %s27, 1
        %s266 = scalar_select %p265, %s27, 1
        %s267 = smul.addr %s266, 16
        %s268 = smul.addr %s267, 8
        %s269 = scalar_lea.vmem %s1, %s268
        %p270 = pneg %p84
        %p271 = pneg %p81
        %p272 = scmp.lt.s32.totalorder %s27, 1
        %s273 = scalar_select %p272, %s27, 1
        %s274 = smul.addr %s273, 16
        %s275 = smul.addr %s274, 8
        %s276 = scalar_lea.vmem %s2, %s275
        %p277 = pneg %p110
        %p278 = pneg %p107
        %p279 = scmp.lt.s32.totalorder %s27, 1
        %s280 = scalar_select %p279, %s27, 1
        %p281 = scmp.lt.s32.totalorder %s28, 0
        %s282 = scalar_select %p281, %s28, 0
        %s283 = sadd.s32 %s282, %s280
        %s284 = smul.addr %s283, 2
        %s285 = scalar_lea.vmem %s3, %s284
        %p286 = pneg %p138
        %p287 = pneg %p135
        %p288 = pneg %p166
        %p289 = pneg %p163
        %s290 = sand.u32 %s153, 1
        %s291 = scalar_lea.sflag [#allocation3], %s290
        %s292 = sand.u32 %s153, 1
        %s293 = smul.addr %s292, 8
        %s294 = scalar_lea.vmem [#allocation2], %s293
        %p295 = pneg %p194
        %p296 = pneg %p191
        %s297 = sand.u32 %s181, 1
        %s298 = scalar_lea.sflag [#allocation5], %s297
        %s299 = sand.u32 %s181, 1
        %s300 = smul.addr %s299, 8
        %s301 = scalar_lea.vmem [#allocation4], %s300
        %p302 = scmp.lt.s32.totalorder %s27, 1
        %s303 = scalar_select %p302, %s27, 1
        %p304 = scmp.lt.s32.totalorder %s28, 0
        %s305 = scalar_select %p304, %s28, 0
        %s306 = sadd.s32 %s305, %s303
        %s307 = smul.addr %s306, 8
        %s308 = scalar_lea.vmem %s0, %s307
        %p309 = scmp.lt.s32.totalorder %s27, 1
        %s310 = scalar_select %p309, %s27, 1
        %s311 = smul.addr %s310, 16
        %s312 = smul.addr %s311, 8
        %s313 = scalar_lea.vmem %s1, %s312
        %p314 = scmp.lt.s32.totalorder %s27, 1
        %s315 = scalar_select %p314, %s27, 1
        %s316 = smul.addr %s315, 16
        %s317 = smul.addr %s316, 8
        %s318 = scalar_lea.vmem %s2, %s317
        %p319 = scmp.lt.s32.totalorder %s27, 1
        %s320 = scalar_select %p319, %s27, 1
        %p321 = scmp.lt.s32.totalorder %s28, 0
        %s322 = scalar_select %p321, %s28, 0
        %s323 = sadd.s32 %s322, %s320
        %s324 = smul.addr %s323, 2
        %s325 = scalar_lea.vmem %s3, %s324
        %v328 = vld [vmem:[%s308] sm:$0xff]
        %v329 = vld [vmem:[%s313] sm:$0xff]
        %v330 = vld [vmem:[%s313 + $0x8] sm:$0xff]
        %v331 = vld [vmem:[%s313 + $0x10] sm:$0xff]
        %v332 = vld [vmem:[%s313 + $0x18] sm:$0xff]
        %v333 = vld [vmem:[%s313 + $0x20] sm:$0xff]
        %v334 = vld [vmem:[%s313 + $0x28] sm:$0xff]
        %v335 = vld [vmem:[%s313 + $0x30] sm:$0xff]
        %v336 = vld [vmem:[%s313 + $0x38] sm:$0xff]
        %v337 = vld [vmem:[%s313 + $0x40] sm:$0xff]
        %v338 = vld [vmem:[%s313 + $0x48] sm:$0xff]
        %v339 = vld [vmem:[%s313 + $0x50] sm:$0xff]
        %v340 = vld [vmem:[%s313 + $0x58] sm:$0xff]
        %v341 = vld [vmem:[%s313 + $0x60] sm:$0xff]
        %v342 = vld [vmem:[%s313 + $0x68] sm:$0xff]
        %v343 = vld [vmem:[%s313 + $0x70] sm:$0xff]
        %v344 = vld [vmem:[%s313 + $0x78] sm:$0xff]
        %v345 = vld [vmem:[%s318] sm:$0xff]
        %v346 = vld [vmem:[%s318 + $0x8] sm:$0xff]
        %v347 = vld [vmem:[%s318 + $0x10] sm:$0xff]
        %v348 = vld [vmem:[%s318 + $0x18] sm:$0xff]
        %v349 = vld [vmem:[%s318 + $0x20] sm:$0xff]
        %v350 = vld [vmem:[%s318 + $0x28] sm:$0xff]
        %v351 = vld [vmem:[%s318 + $0x30] sm:$0xff]
        %v352 = vld [vmem:[%s318 + $0x38] sm:$0xff]
        %v353 = vld [vmem:[%s318 + $0x40] sm:$0xff]
        %v354 = vld [vmem:[%s318 + $0x48] sm:$0xff]
        %v355 = vld [vmem:[%s318 + $0x50] sm:$0xff]
        %v356 = vld [vmem:[%s318 + $0x58] sm:$0xff]
        %v357 = vld [vmem:[%s318 + $0x60] sm:$0xff]
        %v358 = vld [vmem:[%s318 + $0x68] sm:$0xff]
        %v359 = vld [vmem:[%s318 + $0x70] sm:$0xff]
        %v360 = vld [vmem:[%s318 + $0x78] sm:$0xff]
        %v361 = vmul.f32 %v328, 0.17677669
        %vm362 = vcmask 261120
        %v364 = vsel %vm362, %v361, 0
        %v367 = vsel %vm362, %v329, 0
        %v370 = vsel %vm362, %v330, 0
        %v373 = vsel %vm362, %v331, 0
        %v376 = vsel %vm362, %v332, 0
        %v379 = vsel %vm362, %v333, 0
        %v382 = vsel %vm362, %v334, 0
        %v385 = vsel %vm362, %v335, 0
        %v388 = vsel %vm362, %v336, 0
        %v391 = vsel %vm362, %v337, 0
        %v394 = vsel %vm362, %v338, 0
        %v397 = vsel %vm362, %v339, 0
        %v400 = vsel %vm362, %v340, 0
        %v403 = vsel %vm362, %v341, 0
        %v406 = vsel %vm362, %v342, 0
        %v409 = vsel %vm362, %v343, 0
        %v412 = vsel %vm362, %v344, 0
        %414 = vmatpush.xpose.msra.mxu0 %v412
        %415 = vmatpush.xpose.msra.mxu0 %v409
        %416 = vmatpush.xpose.msra.mxu0 %v406
        %417 = vmatpush.xpose.msra.mxu0 %v403
        %418 = vmatpush.xpose.msra.mxu0 %v400
        %419 = vmatpush.xpose.msra.mxu0 %v397
        %420 = vmatpush.xpose.msra.mxu0 %v394
        %421 = vmatpush.xpose.msra.mxu0 %v391
        %422 = vmatpush.xpose.msra.mxu0 %v388
        %423 = vmatpush.xpose.msra.mxu0 %v385
        %424 = vmatpush.xpose.msra.mxu0 %v382
        %425 = vmatpush.xpose.msra.mxu0 %v379
        %426 = vmatpush.xpose.msra.mxu0 %v376
        %427 = vmatpush.xpose.msra.mxu0 %v373
        %428 = vmatpush.xpose.msra.mxu0 %v370
        %429 = vmatpush.xpose.msra.mxu0 %v367
        %430 = vmatmul.f32.gmra.mxu0 %v364
        %v431 = vpop.f32.mrf.mxu0
        %v432 = vadd.f32 0.0, %v431
        %433 = vdwg.mxu0
        %v434 = vld [vmem:[%s325] sm:$0x3]
        %vm435 = vnez %v434
        %v436 = vsel %vm435, 16843009, 0
        %v437 = vunpack.c.0.s8 %v436
        %vm438 = vcmp.ne.s32.totalorder %v437, 0
        %v439 = vsel %vm438, -1e+30, %v432
        %v440 = vlaneseq
        %v441 = vand.u32 %v440, 127
        %vm442 = vcmp.ge.s32.totalorder %v441, 8
        %v443 = vsel %vm442, -1e+30, %v439
        %444 = vmax.xlane.f32.xlu0 %v443
        %v445 = vpop.xlane.xlu0 %444
        %v446 = vsub.f32 %v443, %v445
        %v447 = vmul.f32 %v446, 1.442695
        %v448 = vpow.pop %v447
        %449 = vadd.xlane.f32.xlu0 %v448
        %v450 = vpop.xlane.xlu0 %449
        %v451 = vrcp.pop %v450
        %v452 = vmul.f32 %v450, %v451
        %v453 = vsub.f32 1.0, %v452
        %v454 = vmul.f32 %v451, %v453
        %v455 = vadd.f32 %v451, %v454
        %vm456 = vweird.f32 %v450
        %vm457 = vweird.f32 %v451
        %vm458 = vmor %vm456, %vm457
        %v459 = vsel %vm458, %v451, %v455
        %v460 = vand.u32 2147483647, %v450
        %vm461 = vcmp.eq.f32.partialorder %v460, 8.507059e+37
        %v462 = vand.u32 %v450, 2147483648
        %v463 = vor.u32 1.1754944e-38, %v462
        %v464 = vsel %vm461, %v463, %v459
        %v465 = vmul.f32 %v448, %v464
        %466 = vmatpush.msra.mxu0 %v360
        %467 = vmatpush.msra.mxu0 %v359
        %468 = vmatpush.msra.mxu0 %v358
        %469 = vmatpush.msra.mxu0 %v357
        %470 = vmatpush.msra.mxu0 %v356
        %471 = vmatpush.msra.mxu0 %v355
        %472 = vmatpush.msra.mxu0 %v354
        %473 = vmatpush.msra.mxu0 %v353
        %474 = vmatpush.msra.mxu0 %v352
        %475 = vmatpush.msra.mxu0 %v351
        %476 = vmatpush.msra.mxu0 %v350
        %477 = vmatpush.msra.mxu0 %v349
        %478 = vmatpush.msra.mxu0 %v348
        %479 = vmatpush.msra.mxu0 %v347
        %480 = vmatpush.msra.mxu0 %v346
        %481 = vmatpush.msra.mxu0 %v345
        %482 = vmatmul.f32.gmra.mxu0 %v465
        %v483 = vpop.f32.mrf.mxu0
        %v484 = vadd.f32 0.0, %v483
        %485 = vdwg.mxu0
        %486 = vst [vmem:[%s294] sm:$0xff] %v484
        %487 = vst [vmem:[%s301] sm:$0xff] %v465
        %s488 = sand.u32 %s153, 1
        %s489 = scalar_lea.sflag [#allocation3], %s488
        %s490 = sand.u32 %s153, 1
        %s491 = smul.addr %s490, 8
        %s492 = scalar_lea.vmem [#allocation2], %s491
        %s493 = sand.u32 %s181, 1
        %s494 = scalar_lea.sflag [#allocation5], %s493
        %s495 = sand.u32 %s181, 1
        %s496 = smul.addr %s495, 8
        %s497 = scalar_lea.vmem [#allocation4], %s496
        // Predicated region
        $region37: #{tpu_custom_call.1} parent=35 // pred_check
          %p498 = pneg %p163
        $region38: #{tpu_custom_call.1} parent=35 // pred_check_branch
          %500 = sbr.rel (%p498) target = $region40
        $region39: #{tpu_custom_call.1} parent=35 // pred_region
          %502 = vsyncadd %s489, 0
          %s503 = sadd.s32 %s28, %s27
          %s504 = smul.addr %s503, 8
          %s505 = scalar_lea.hbm %s4, %s504
          %s507 = sshll.u32 %s492, 4
          %s508 = int_to_ptr.vmem [resolvable:$true] %s507
          %s509 = sshll.u32 %s505, 4
          %s510 = int_to_ptr.hbm [resolvable:$true] %s509
          %512 = dma.vmem_to_hbm [thread:$0]  %s508, 128, %s510, %s489
        $region40: #{tpu_custom_call.1} parent=35 // pred_fallthru
          _
        // Predicated region
        $region41: #{tpu_custom_call.1} parent=35 // pred_check
          %p513 = pneg %p191
        $region42: #{tpu_custom_call.1} parent=35 // pred_check_branch
          %515 = sbr.rel (%p513) target = $region44
        $region43: #{tpu_custom_call.1} parent=35 // pred_region
          %517 = vsyncadd %s494, 0
          %s518 = sadd.s32 %s28, %s27
          %s519 = smul.addr %s518, 8
          %s520 = scalar_lea.hbm %s5, %s519
          %s522 = sshll.u32 %s497, 4
          %s523 = int_to_ptr.vmem [resolvable:$true] %s522
          %s524 = sshll.u32 %s520, 4
          %s525 = int_to_ptr.hbm [resolvable:$true] %s524
          %527 = dma.vmem_to_hbm [thread:$0]  %s523, 128, %s525, %s494
        $region44: #{tpu_custom_call.1} parent=35 // pred_fallthru
          _
      $region36: #{tpu_custom_call.1} parent=5 // pred_fallthru
        _
      %p528 = scmp.le.s32.totalorder 2, %s18
      // Predicated region
      $region45: #{tpu_custom_call.1} parent=5 // pred_check
        %p529 = pneg %p528
      $region46: #{tpu_custom_call.1} parent=5 // pred_check_branch
        %531 = sbr.rel (%p529) target = $region48
      $region47: #{tpu_custom_call.1} parent=5 // pred_region
        %s532 = ssub.s32 %s18, 2
        // Predicated region
        $region49: #{tpu_custom_call.1} parent=47 // pred_check
          %p533 = pneg %p169
        $region50: #{tpu_custom_call.1} parent=47 // pred_check_branch
          %535 = sbr.rel (%p533) target = $region52
        $region51: #{tpu_custom_call.1} parent=47 // pred_region
          %s536 = sand.u32 %s154, 1
          %s537 = scalar_lea.sflag [#allocation3], %s536
          %s538 = sand.u32 %s154, 1
          %s539 = smul.addr %s538, 8
          %s540 = scalar_lea.vmem [#allocation2], %s539
          %542 = dma.done %s537, 128
        $region52: #{tpu_custom_call.1} parent=47 // pred_fallthru
          _
        // Predicated region
        $region53: #{tpu_custom_call.1} parent=47 // pred_check
          %p543 = pneg %p197
        $region54: #{tpu_custom_call.1} parent=47 // pred_check_branch
          %545 = sbr.rel (%p543) target = $region56
        $region55: #{tpu_custom_call.1} parent=47 // pred_region
          %s546 = sand.u32 %s182, 1
          %s547 = scalar_lea.sflag [#allocation5], %s546
          %s548 = sand.u32 %s182, 1
          %s549 = smul.addr %s548, 8
          %s550 = scalar_lea.vmem [#allocation4], %s549
          %552 = dma.done %s547, 128
        $region56: #{tpu_custom_call.1} parent=47 // pred_fallthru
          _
      $region48: #{tpu_custom_call.1} parent=5 // pred_fallthru
        _
    $region6: #{tpu_custom_call.1} parent=1 // loop_footer
      %s22 = sadd.s32 1, %s18
    $region7: #{tpu_custom_call.1} parent=1 // loop_footer_branch
      %17 = sbr.rel target = $region3
    $region8: #{tpu_custom_call.1} parent=1 // loop_exit
      _
    %553 = vsyncpa [#allocation3], 1
    %s554 = scalar_lea.sflag [#allocation3], 1
    %555 = vsyncpa %s554, 1
    %556 = vsyncpa [#allocation5], 1
    %s557 = scalar_lea.sflag [#allocation5], 1
    %558 = vsyncpa %s557, 1

</llo_original>
